<compile_context>
chip_gen: v7x
topology: tpu7x:2x2x1
jax: 0.10.0
libtpu: 0.0.40
codegen_flags: <defaults>
</compile_context>

<pallas_src>
import jax
import jax.numpy as jnp
from jax.experimental import pallas as pl
from jax.experimental.pallas import tpu as pltpu


def _modulate_additive_kernel(w_ref, e_ref, o_ref):
    # out = weight + emb  (VPU elementwise on the whole tile)
    o_ref[...] = w_ref[...] + e_ref[...]


def _modulate_multiplicative_kernel(w_ref, e_ref, o_ref):
    # out = weight * (1 - emb); scalar constant -> 2 VALU ops, no ones tile.
    o_ref[...] = w_ref[...] * (1.0 - e_ref[...])


def modulate_weight_keep_grads(
    weight: jax.Array,
    emb: jax.Array,
    additive: bool,
    *,
    lanes: int = 512,
    tile_rows: int = 512,
    donate_weight: bool = False,
) -> jax.Array:
    """Pallas equivalent of Modulate_weight_keep_grads.forward.

    lanes:      trailing (lane) width of the 2-D slab, multiple of 128.
    tile_rows:  rows per grid block, multiple of 8. Default 512x512 f32 block
                = 1 MiB per operand -> ~6 MiB double-buffered VMEM footprint.
    donate_weight: alias the output onto the weight input buffer (only safe if
                the caller does not need the original weight afterwards).
    """
    assert lanes % 128 == 0, "lanes must be a multiple of 128 (lane width)"
    assert tile_rows % 8 == 0, "tile_rows must be a multiple of 8 (sublanes)"

    # PyTorch promotes dtypes before computing; do the same.
    out_dtype = jnp.promote_types(weight.dtype, emb.dtype)

    if emb.shape != weight.shape:
        # TODO(synk): for per-channel modulation, express the broadcast via the
        # emb BlockSpec index_map instead of materializing a weight-sized emb.
        emb = jnp.broadcast_to(emb, jnp.broadcast_shapes(weight.shape, emb.shape))

    orig_shape = weight.shape
    n = int(weight.size)

    w_flat = weight.reshape(-1).astype(out_dtype)
    e_flat = emb.reshape(-1).astype(out_dtype)

    # Lane-dense 2-D slab: (rows, lanes); pad the tail only if unavoidable.
    rows = pl.cdiv(n, lanes)
    n_pad = rows * lanes
    if n_pad != n:
        w_flat = jnp.pad(w_flat, (0, n_pad - n))
        e_flat = jnp.pad(e_flat, (0, n_pad - n))
    w2 = w_flat.reshape(rows, lanes)
    e2 = e_flat.reshape(rows, lanes)

    grid_rows = pl.cdiv(rows, tile_rows)
    # Full-extent block when everything fits in one tile (always legal, no
    # (8,128) divisibility requirement); otherwise (tile_rows, lanes) blocks —
    # boundary blocks along rows are handled by Pallas (masked writeback).
    block_rows = rows if grid_rows == 1 else tile_rows

    kernel = _modulate_additive_kernel if additive else _modulate_multiplicative_kernel
    spec = pl.BlockSpec((block_rows, lanes), lambda i: (i, 0))

    extra_kwargs = {}
    if donate_weight:
        extra_kwargs["input_output_aliases"] = {0: 0}

    out2 = pl.pallas_call(
        kernel,
        out_shape=jax.ShapeDtypeStruct((rows, lanes), out_dtype),
        grid=(grid_rows,),
        in_specs=[spec, spec],
        out_specs=spec,
        compiler_params=pltpu.CompilerParams(
            dimension_semantics=("parallel",),  # independent blocks; TC sharding on v7x
        ),
        **extra_kwargs,
    )(w2, e2)

    out_flat = out2.reshape(-1)
    if n_pad != n:
        out_flat = out_flat[:n]
    return out_flat.reshape(orig_shape)


if __name__ == "__main__":
    key = jax.random.PRNGKey(0)
    k_w, k_e, k_w2, k_e2, k_eb = jax.random.split(key, 5)

    # --- Test A: module-scale small conv weight, OIHW (4, 4, 3, 3) ---------
    # Single full-extent block (144 elems padded to one 512-lane row).
    weight = jax.random.normal(k_w, (4, 4, 3, 3), dtype=jnp.float32)
    emb = jax.random.normal(k_e, (4, 4, 3, 3), dtype=jnp.float32)

    out_add = jax.block_until_ready(modulate_weight_keep_grads(weight, emb, additive=True))
    out_mul = jax.block_until_ready(modulate_weight_keep_grads(weight, emb, additive=False))

    assert out_add.shape == weight.shape and out_add.dtype == weight.dtype
    assert out_mul.shape == weight.shape and out_mul.dtype == weight.dtype
    assert jnp.allclose(out_add, weight + emb, atol=1e-6, rtol=1e-6)
    assert jnp.allclose(out_mul, weight * (1.0 - emb), atol=1e-6, rtol=1e-6)

    # --- Test B: larger weight with small tiles to exercise the tiled,  ----
    # --- pipelined multi-block path (incl. a boundary block: 36 rows / 8) --
    w_big = jax.random.normal(k_w2, (32, 16, 3, 3), dtype=jnp.float32)  # 4608 elems
    e_big = jax.random.normal(k_e2, (32, 16, 3, 3), dtype=jnp.float32)
    out_big_add = jax.block_until_ready(
        modulate_weight_keep_grads(w_big, e_big, additive=True, lanes=128, tile_rows=8))
    out_big_mul = jax.block_until_ready(
        modulate_weight_keep_grads(w_big, e_big, additive=False, lanes=128, tile_rows=8))
    assert jnp.allclose(out_big_add, w_big + e_big, atol=1e-6, rtol=1e-6)
    assert jnp.allclose(out_big_mul, w_big * (1.0 - e_big), atol=1e-6, rtol=1e-6)

    # --- Test C: PyTorch-style broadcasting of a per-channel emb -----------
    e_chan = jax.random.normal(k_eb, (32, 1, 1, 1), dtype=jnp.float32)
    out_bcast = jax.block_until_ready(
        modulate_weight_keep_grads(w_big, e_chan, additive=False))
    assert jnp.allclose(out_bcast, w_big * (1.0 - e_chan), atol=1e-6, rtol=1e-6)

    print("KERNEL_OK")
</pallas_src>

<mosaic_0001>
module attributes {stable_mosaic.version = 11 : i64} {
  func.func @_modulate_additive_kernel(%arg0: i32, %arg1: memref<1x512xf32, #tpu.memory_space<vmem>>, %arg2: memref<1x512xf32, #tpu.memory_space<vmem>>, %arg3: memref<1x512xf32, #tpu.memory_space<vmem>>) attributes {dimension_semantics = [#tpu.dimension_semantics<parallel>], iteration_bounds = array<i64: 1>, scalar_prefetch = 0 : i64, scratch_operands = 0 : i64, tpu.core_type = #tpu.core_type<tc>, window_params = [{transform_indices = @transform_0, window_bounds = array<i64: 1, 512>}, {transform_indices = @transform_1, window_bounds = array<i64: 1, 512>}, {transform_indices = @transform_2, window_bounds = array<i64: 1, 512>}]} {
    %c0 = arith.constant 0 : index
    %c0_0 = arith.constant 0 : index
    %0 = vector.load %arg1[%c0, %c0_0] : memref<1x512xf32, #tpu.memory_space<vmem>>, vector<1x512xf32>
    %c0_1 = arith.constant 0 : index
    %c0_2 = arith.constant 0 : index
    %1 = vector.load %arg2[%c0_1, %c0_2] : memref<1x512xf32, #tpu.memory_space<vmem>>, vector<1x512xf32>
    %2 = arith.addf %0, %1 : vector<1x512xf32>
    %c0_3 = arith.constant 0 : index
    %c0_4 = arith.constant 0 : index
    %3 = vector.load %arg3[%c0_3, %c0_4] : memref<1x512xf32, #tpu.memory_space<vmem>>, vector<1x512xf32>
    tpu.vector_store %arg3[%c0_3, %c0_4], %2 {strides = array<i32>} : memref<1x512xf32, #tpu.memory_space<vmem>>, vector<1x512xf32>,
    return
  }
  func.func @transform_0(%arg0: i32) -> (i32, i32) {
    %c0_i32 = arith.constant 0 : i32
    %c0_i32_0 = arith.constant 0 : i32
    return %arg0, %c0_i32 : i32, i32
  }
  func.func @transform_1(%arg0: i32) -> (i32, i32) {
    %c0_i32 = arith.constant 0 : i32
    %c0_i32_0 = arith.constant 0 : i32
    return %arg0, %c0_i32 : i32, i32
  }
  func.func @transform_2(%arg0: i32) -> (i32, i32) {
    %c0_i32 = arith.constant 0 : i32
    %c0_i32_0 = arith.constant 0 : i32
    return %arg0, %c0_i32 : i32, i32
  }
}

</mosaic_0001>

<llo_original>
// kernel: tpu_custom_call.1
$region0: #{tpu_custom_call.1}
  #allocation0 [shape = 'u32[]', space=smem, size = 0x4, offset = 0x4, fixed_abs, tag = 'smem constant byte address 0x4 - core index']
  #allocation1 [shape = 'u32[144,128]{1,0:T(1,128)}', space=vmem, size = 0x12000, scoped, tag = 'internal scratch']
  %s0 = inlined_call_operand.hbm [shape: f32[1,512], index: 0, kind: input, shape index: {}]
  %s1 = inlined_call_operand.hbm [shape: f32[1,512], index: 1, kind: input, shape index: {}]
  %s2 = inlined_call_operand.hbm [shape: f32[1,512], index: 2, kind: output, shape index: {}]
  %s3 = sld [smem:[#allocation0]]
  $region26: #{tpu_custom_call.1} parent=0
    _
  %s5 = ssub.s32 1, %s3
  %s6 = scalar_select 0, %s5, %s3
  $region1: #{tpu_custom_call.1} parent=0
    #allocation2 [shape = 'u8[2048]{0}', space=vmem, size = 0x800, scoped, tag = 'input window, operand 0, single buffered']
    #allocation3 [shape = 's32[1]{0}', space=sflag, size = 0x4, scoped, tag = 'scoped memory for tpu_custom_call.1']
    #allocation4 [shape = 's32[1]{0}', space=sflag, size = 0x4, scoped, tag = 'scoped memory for tpu_custom_call.1']
    #allocation5 [shape = 'u8[2048]{0}', space=vmem, size = 0x800, scoped, tag = 'input window, operand 1, single buffered']
    #allocation6 [shape = 's32[1]{0}', space=sflag, size = 0x4, scoped, tag = 'scoped memory for tpu_custom_call.1']
    #allocation7 [shape = 'u8[2048]{0}', space=vmem, size = 0x800, scoped, tag = 'output window, operand 0, single buffered']
    %7 = vsyncpa [#allocation3], 0
    %8 = vsyncpa [#allocation6], 0
    %9 = vsyncpa [#allocation4], 0
    // Predicated region
    $region2: #{tpu_custom_call.1} parent=1 // pred_check
      _
    $region3: #{tpu_custom_call.1} parent=1 // pred_check_branch
      %11 = sbr.rel (0) target = $region5
    $region4: #{tpu_custom_call.1} parent=1 // pred_region
      %s13 = ssub.s32 64, 64
      %14 = vsyncadd [#allocation3], %s13
      %s16 = sshll.u32 [#allocation2], 4
      %s17 = int_to_ptr.vmem [resolvable:$true] %s16
      %19 = dma.hbm_to_vmem [thread:$0]  %s0, 64, %s17, [#allocation3]
    $region5: #{tpu_custom_call.1} parent=1 // pred_fallthru
      _
    // Predicated region
    $region6: #{tpu_custom_call.1} parent=1 // pred_check
      _
    $region7: #{tpu_custom_call.1} parent=1 // pred_check_branch
      %21 = sbr.rel (0) target = $region9
    $region8: #{tpu_custom_call.1} parent=1 // pred_region
      %s23 = ssub.s32 64, 64
      %24 = vsyncadd [#allocation6], %s23
      %s26 = sshll.u32 [#allocation5], 4
      %s27 = int_to_ptr.vmem [resolvable:$true] %s26
      %29 = dma.hbm_to_vmem [thread:$0]  %s1, 64, %s27, [#allocation6]
    $region9: #{tpu_custom_call.1} parent=1 // pred_fallthru
      _
    // Predicated region
    $region10: #{tpu_custom_call.1} parent=1 // pred_check
      _
    $region11: #{tpu_custom_call.1} parent=1 // pred_check_branch
      %31 = sbr.rel (0) target = $region13
    $region12: #{tpu_custom_call.1} parent=1 // pred_region
      %32 = dma.done [#allocation3], 64
    $region13: #{tpu_custom_call.1} parent=1 // pred_fallthru
      _
    // Predicated region
    $region14: #{tpu_custom_call.1} parent=1 // pred_check
      _
    $region15: #{tpu_custom_call.1} parent=1 // pred_check_branch
      %34 = sbr.rel (0) target = $region17
    $region16: #{tpu_custom_call.1} parent=1 // pred_region
      %35 = dma.done [#allocation6], 64
    $region17: #{tpu_custom_call.1} parent=1 // pred_fallthru
      _
    %v36 = vld [vmem:[#allocation2] sm:$0xf]
    %v37 = vld [vmem:[#allocation5] sm:$0xf]
    %v38 = vadd.f32 %v36, %v37
    %v39 = vlaneseq
    %vm40 = vcmp.ge.s32.totalorder %v39, 0
    %vm41 = vcmp.lt.s32.totalorder %v39, 512
    %vm42 = vmand %vm40, %vm41
    %43 = vst.msk [vmem:[#allocation7] sm:$0xf] %vm42, %v38
    // Predicated region
    $region18: #{tpu_custom_call.1} parent=1 // pred_check
      _
    $region19: #{tpu_custom_call.1} parent=1 // pred_check_branch
      %45 = sbr.rel (0) target = $region21
    $region20: #{tpu_custom_call.1} parent=1 // pred_region
      %s47 = ssub.s32 64, 64
      %48 = vsyncadd [#allocation4], %s47
      %s50 = sshll.u32 [#allocation7], 4
      %s51 = int_to_ptr.vmem [resolvable:$true] %s50
      %53 = dma.vmem_to_hbm [thread:$0]  %s51, 64, %s2, [#allocation4]
    $region21: #{tpu_custom_call.1} parent=1 // pred_fallthru
      _
    // Predicated region
    $region22: #{tpu_custom_call.1} parent=1 // pred_check
      _
    $region23: #{tpu_custom_call.1} parent=1 // pred_check_branch
      %55 = sbr.rel (0) target = $region25
    $region24: #{tpu_custom_call.1} parent=1 // pred_region
      %56 = dma.done [#allocation4], 64
    $region25: #{tpu_custom_call.1} parent=1 // pred_fallthru
      _
    %57 = vsyncpa [#allocation3], 1
    %58 = vsyncpa [#allocation6], 1
    %59 = vsyncpa [#allocation4], 1

</llo_original>
